<compile_context>
chip_gen: v7x
topology: tpu7x:2x2x1
jax: 0.10.0
libtpu: 0.0.40
codegen_flags: <defaults>
</compile_context>

<pallas_src>
import functools

import numpy as np
import jax
import jax.numpy as jnp
from jax import lax
from jax.experimental import pallas as pl
from jax.experimental.pallas import tpu as pltpu

LANE = 128
NEG_INF = -1e30      # finite mask value (avoids -inf - -inf = NaN)


def _ru(x, m):
    return (x + m - 1) // m * m


def _objective_kernel(emb_ref, counts_ref, msg_ref, loss_ref, *, L, V, Vseg,
                      use_bf16_exp):
    # emb_ref:    (L*Vseg, C)  packed/transposed table, resident in VMEM (bf16)
    # counts_ref: (C, TB)      per-example concept counts (bf16, exact small ints)
    # msg_ref:    (L, TB)      int32 target tokens
    # loss_ref:   (1, TB)      f32 per-example loss (lane-dense row)
    tb = counts_ref.shape[1]

    # Fused additive composition for all L positions: one MXU matmul, f32 accum.
    logits = jnp.dot(emb_ref[...], counts_ref[...],
                     preferred_element_type=jnp.float32)            # (L*Vseg, TB)
    lv = logits.reshape(L, Vseg, tb)                                 # free leading split

    v_idx = lax.broadcasted_iota(jnp.int32, (L, Vseg, tb), 1)        # vocab index
    valid = v_idx < V
    lm = jnp.where(valid, lv, NEG_INF)                               # mask vocab padding

    mx = jnp.max(lm, axis=1, keepdims=True)                          # (L, 1, TB)
    diff = lm - mx
    if use_bf16_exp:                                                 # v6e/v7x bf16 EUP
        e = jnp.exp(diff.astype(jnp.bfloat16)).astype(jnp.float32)
    else:
        e = jnp.exp(diff)
    lse = mx + jnp.log(jnp.sum(e, axis=1, keepdims=True))            # (L, 1, TB)

    tmask = v_idx == msg_ref[...].reshape(L, 1, tb)                  # target one-hot
    tgt = jnp.sum(jnp.where(tmask, lv, 0.0), axis=1, keepdims=True)  # (L, 1, TB)

    nll = jnp.sum(lse - tgt, axis=0) * (1.0 / float(L))              # (1, TB)
    loss_ref[...] = nll


def pack_objective_table(emb_weight, message_length, vocab_size,
                         dtype=jnp.bfloat16):
    """nn.Embedding weight (C, L*V) -> packed/transposed (L*Vseg, C) table.

    Hoisted out of the per-call path: compute once per set of embedding weights.
    """
    C = emb_weight.shape[0]
    L, V = message_length, vocab_size
    assert emb_weight.shape[1] == L * V
    Vseg = _ru(V, 8)
    emb = emb_weight.reshape(C, L, V)
    emb = jnp.pad(emb, ((0, 0), (0, 0), (0, Vseg - V)))              # (C, L, Vseg)
    return jnp.transpose(emb.reshape(C, L * Vseg)).astype(dtype)     # (L*Vseg, C)


def objective_forward(emb_packed, messages, leaf_ids, *, vocab_size,
                      tb=None, use_bf16_exp=None):
    """Per-example additive-composition cross-entropy loss.

    emb_packed: (L*Vseg, C) from pack_objective_table
    messages:   (B, L) int  target tokens
    leaf_ids:   (B, N) int  leaf concept ids of each derivation tree
    returns:    (B,) f32
    """
    V = vocab_size
    Vseg = _ru(V, 8)
    LVseg, C = emb_packed.shape
    L = LVseg // Vseg
    B = messages.shape[0]
    assert messages.shape[1] == L

    if use_bf16_exp is None:
        kind = jax.devices()[0].device_kind.lower()
        use_bf16_exp = ("v6" in kind) or ("v7" in kind)   # bf16 EUP/VPU generations

    # Tile size: lane-dense (multiple of 128); default 512; clamp so the 1-D grid has
    # >= 2 steps when the batch allows it (both v7x TensorCores get work).
    if tb is None:
        tb = 512
    half = _ru(max((B + 1) // 2, 1), LANE)
    tb = max(LANE, min(_ru(tb, LANE), half))
    Bp = _ru(B, tb)

    # Additive composition over leaves == concept-count matrix (exact in bf16).
    counts_t = jnp.transpose(
        jax.nn.one_hot(leaf_ids, C, dtype=jnp.bfloat16).sum(axis=1))     # (C, B)
    counts_t = jnp.pad(counts_t, ((0, 0), (0, Bp - B)))                  # (C, Bp)
    msg_t = jnp.pad(jnp.transpose(messages.astype(jnp.int32)),
                    ((0, 0), (0, Bp - B)))                               # (L, Bp)

    # VMEM budget: double-buffered tiles at their true (sublane x 128-lane)-padded
    # footprint, plus headroom for f32 intermediates / internal scratch.
    emb_bytes = _ru(LVseg, 16) * _ru(C, LANE) * emb_packed.dtype.itemsize
    counts_bytes = _ru(C, 16) * tb * 2          # bf16
    msg_bytes = _ru(L, 8) * tb * 4              # int32
    out_bytes = 8 * tb * 4                      # f32, sublane-padded row
    tiles = 2 * (emb_bytes + counts_bytes + msg_bytes + out_bytes)
    vmem_limit = int(min(max(tiles + (8 << 20), 16 << 20), 48 << 20))

    kernel = functools.partial(_objective_kernel, L=L, V=V, Vseg=Vseg,
                               use_bf16_exp=bool(use_bf16_exp))
    out = pl.pallas_call(
        kernel,
        out_shape=jax.ShapeDtypeStruct((1, Bp), jnp.float32),
        grid_spec=pltpu.PrefetchScalarGridSpec(
            num_scalar_prefetch=0,
            grid=(Bp // tb,),
            in_specs=[
                pl.BlockSpec((LVseg, C), lambda i: (0, 0)),   # table, resident
                pl.BlockSpec((C, tb), lambda i: (0, i)),      # counts column block
                pl.BlockSpec((L, tb), lambda i: (0, i)),      # target column block
            ],
            out_specs=pl.BlockSpec((1, tb), lambda i: (0, i)),
        ),
        compiler_params=pltpu.CompilerParams(
            dimension_semantics=("parallel",),
            vmem_limit_bytes=vmem_limit),
    )(emb_packed, counts_t, msg_t)
    return out[0, :B]


def flatten_derivation(d):
    """Flatten a nested-tuple derivation tree into its leaf concept ids."""
    if isinstance(d, tuple):
        out = []
        for node in d:
            out.extend(flatten_derivation(node))
        return out
    return [int(d)]


if __name__ == "__main__":
    num_concepts, vocab_size, message_length = 10, 8, 4
    B = 2

    key = jax.random.PRNGKey(0)
    k_emb, k_msg = jax.random.split(key)

    # nn.Embedding(num_concepts, message_length * vocab_size), default init ~ N(0, 1)
    emb_weight = jax.random.normal(
        k_emb, (num_concepts, message_length * vocab_size), jnp.float32)

    # One (nested-tuple) derivation per example; additive composition => leaf sum.
    derivations = [((0, 3), 7), ((5, 2), 9)]
    leaves = [flatten_derivation(d) for d in derivations]
    assert len({len(l) for l in leaves}) == 1, "examples must have equal leaf counts"
    leaf_ids = jnp.asarray(leaves, dtype=jnp.int32)                   # (B, N_LEAVES)

    messages = jax.random.randint(
        k_msg, (B, message_length), 0, vocab_size, dtype=jnp.int32)   # (B, L)

    # Table packing is hoisted out of the per-call path (done once).
    emb_packed = pack_objective_table(emb_weight, message_length, vocab_size)

    loss = objective_forward(emb_packed, messages, leaf_ids, vocab_size=vocab_size)
    loss = jax.block_until_ready(loss)

    # Pure-JAX f32 reference (additive composition + per-position cross-entropy).
    composed = emb_weight[leaf_ids].sum(axis=1).reshape(B, message_length, vocab_size)
    log_z = jax.scipy.special.logsumexp(composed, axis=-1)
    tgt = jnp.take_along_axis(composed, messages[..., None], axis=-1)[..., 0]
    ref = (log_z - tgt).mean(axis=-1)
    # bf16 table + (on v6e/v7x) bf16 exp => relaxed tolerance vs the f32 reference.
    np.testing.assert_allclose(np.asarray(loss), np.asarray(ref), rtol=2e-2, atol=2e-2)

    print("KERNEL_OK")
</pallas_src>

<mosaic_0001>
module attributes {stable_mosaic.version = 11 : i64} {
  func.func @_objective_kernel(%arg0: i32, %arg1: memref<32x10xbf16, #tpu.memory_space<vmem>>, %arg2: memref<10x128xbf16, #tpu.memory_space<vmem>>, %arg3: memref<4x128xi32, #tpu.memory_space<vmem>>, %arg4: memref<1x128xf32, #tpu.memory_space<vmem>>) attributes {dimension_semantics = [#tpu.dimension_semantics<parallel>], iteration_bounds = array<i64: 1>, scalar_prefetch = 0 : i64, scratch_operands = 0 : i64, tpu.core_type = #tpu.core_type<tc>, window_params = [{pipeline_mode = #tpu.pipeline_mode<synchronous>, transform_indices = @transform_0, window_bounds = array<i64: 32, 10>}, {transform_indices = @transform_1, window_bounds = array<i64: 10, 128>}, {transform_indices = @transform_2, window_bounds = array<i64: 4, 128>}, {transform_indices = @transform_3, window_bounds = array<i64: 1, 128>}]} {
    %c0 = arith.constant 0 : index
    %c0_0 = arith.constant 0 : index
    %0 = vector.load %arg1[%c0, %c0_0] : memref<32x10xbf16, #tpu.memory_space<vmem>>, vector<32x10xbf16>
    %c0_1 = arith.constant 0 : index
    %c0_2 = arith.constant 0 : index
    %1 = vector.load %arg2[%c0_1, %c0_2] : memref<10x128xbf16, #tpu.memory_space<vmem>>, vector<10x128xbf16>
    %cst = arith.constant dense<0.000000e+00> : vector<32x128xf32>
    %2 = tpu.matmul %0, %1, %cst {dimension_numbers = #tpu.dot_dimension_numbers<[1], [0], [0], [1], [0, 0, 1, 1], [], []>} : vector<32x10xbf16>, vector<10x128xbf16>, vector<32x128xf32> -> vector<32x128xf32>
    %3 = vector.shape_cast %2 : vector<32x128xf32> to vector<4x8x128xf32>
    %4 = tpu.iota {dimensions = array<i32: 1>} : vector<4x8x128xi32>
    %c8_i32 = arith.constant 8 : i32
    %5 = vector.broadcast %c8_i32 : i32 to vector<4x8x128xi32>
    %6 = arith.cmpi slt, %4, %5 : vector<4x8x128xi32>
    %cst_3 = arith.constant -1.000000e+30 : f32
    %7 = vector.broadcast %cst_3 : f32 to vector<4x8x128xf32>
    %8 = arith.select %6, %3, %7 : vector<4x8x128xi1>, vector<4x8x128xf32>
    %cst_4 = arith.constant dense<0xFF800000> : vector<4x128xf32>
    %9 = vector.multi_reduction <maximumf>, %8, %cst_4 [1] : vector<4x8x128xf32> to vector<4x128xf32>
    %10 = vector.shape_cast %9 : vector<4x128xf32> to vector<4x1x128xf32>
    %11 = vector.broadcast %10 : vector<4x1x128xf32> to vector<4x8x128xf32>
    %12 = arith.subf %8, %11 : vector<4x8x128xf32>
    %13 = math.exp %12 : vector<4x8x128xf32>
    %cst_5 = arith.constant dense<0.000000e+00> : vector<4x128xf32>
    %14 = vector.multi_reduction <add>, %13, %cst_5 [1] : vector<4x8x128xf32> to vector<4x128xf32>
    %15 = vector.shape_cast %14 : vector<4x128xf32> to vector<4x1x128xf32>
    %16 = math.log %15 : vector<4x1x128xf32>
    %17 = arith.addf %10, %16 : vector<4x1x128xf32>
    %c0_6 = arith.constant 0 : index
    %c0_7 = arith.constant 0 : index
    %18 = vector.load %arg3[%c0_6, %c0_7] : memref<4x128xi32, #tpu.memory_space<vmem>>, vector<4x128xi32>
    %19 = vector.shape_cast %18 : vector<4x128xi32> to vector<4x1x128xi32>
    %20 = vector.broadcast %19 : vector<4x1x128xi32> to vector<4x8x128xi32>
    %21 = arith.cmpi eq, %4, %20 : vector<4x8x128xi32>
    %cst_8 = arith.constant 0.000000e+00 : f32
    %22 = vector.broadcast %cst_8 : f32 to vector<4x8x128xf32>
    %23 = arith.select %21, %3, %22 : vector<4x8x128xi1>, vector<4x8x128xf32>
    %cst_9 = arith.constant dense<0.000000e+00> : vector<4x128xf32>
    %24 = vector.multi_reduction <add>, %23, %cst_9 [1] : vector<4x8x128xf32> to vector<4x128xf32>
    %25 = vector.shape_cast %24 : vector<4x128xf32> to vector<4x1x128xf32>
    %26 = arith.subf %17, %25 : vector<4x1x128xf32>
    %cst_10 = arith.constant dense<0.000000e+00> : vector<1x128xf32>
    %27 = vector.multi_reduction <add>, %26, %cst_10 [0] : vector<4x1x128xf32> to vector<1x128xf32>
    %cst_11 = arith.constant 2.500000e-01 : f32
    %28 = vector.broadcast %cst_11 : f32 to vector<1x128xf32>
    %29 = arith.mulf %27, %28 : vector<1x128xf32>
    %c0_12 = arith.constant 0 : index
    %c0_13 = arith.constant 0 : index
    %30 = vector.load %arg4[%c0_12, %c0_13] : memref<1x128xf32, #tpu.memory_space<vmem>>, vector<1x128xf32>
    tpu.vector_store %arg4[%c0_12, %c0_13], %29 {strides = array<i32>} : memref<1x128xf32, #tpu.memory_space<vmem>>, vector<1x128xf32>,
    return
  }
  func.func @transform_0(%arg0: i32) -> (i32, i32) {
    %c0_i32 = arith.constant 0 : i32
    %c0_i32_0 = arith.constant 0 : i32
    %c0_i32_1 = arith.constant 0 : i32
    return %c0_i32, %c0_i32_0 : i32, i32
  }
  func.func @transform_1(%arg0: i32) -> (i32, i32) {
    %c0_i32 = arith.constant 0 : i32
    %c0_i32_0 = arith.constant 0 : i32
    return %c0_i32, %arg0 : i32, i32
  }
  func.func @transform_2(%arg0: i32) -> (i32, i32) {
    %c0_i32 = arith.constant 0 : i32
    %c0_i32_0 = arith.constant 0 : i32
    return %c0_i32, %arg0 : i32, i32
  }
  func.func @transform_3(%arg0: i32) -> (i32, i32) {
    %c0_i32 = arith.constant 0 : i32
    %c0_i32_0 = arith.constant 0 : i32
    return %c0_i32, %arg0 : i32, i32
  }
}

</mosaic_0001>

<llo_original>
// kernel: tpu_custom_call.1
$region0: #{tpu_custom_call.1}
  #allocation0 [shape = 'u32[]', space=smem, size = 0x4, offset = 0x4, fixed_abs, tag = 'smem constant byte address 0x4 - core index']
  #allocation1 [shape = 'u32[144,128]{1,0:T(1,128)}', space=vmem, size = 0x12000, scoped, tag = 'internal scratch']
  %s0 = inlined_call_operand.vmem [shape: bf16[32,10], index: 0, kind: input, shape index: {}]
  %s1 = inlined_call_operand.vmem [shape: bf16[10,128], index: 1, kind: input, shape index: {}]
  %s2 = inlined_call_operand.vmem [shape: s32[4,128], index: 2, kind: input, shape index: {}]
  %s3 = inlined_call_operand.hbm [shape: f32[1,128], index: 3, kind: output, shape index: {}]
  %s4 = sld [smem:[#allocation0]]
  $region22: #{tpu_custom_call.1} parent=0
    _
  %s6 = ssub.s32 1, %s4
  %s7 = scalar_select 0, %s6, %s4
  $region1: #{tpu_custom_call.1} parent=0
    #allocation2 [shape = 'u8[512]{0}', space=vmem, size = 0x400, scoped, tag = 'output window, operand 0, single buffered']
    #allocation3 [shape = 's32[1]{0}', space=sflag, size = 0x4, scoped, tag = 'scoped memory for tpu_custom_call.1']
    %8 = vsyncpa [#allocation3], 0
    // Predicated region
    $region2: #{tpu_custom_call.1} parent=1 // pred_check
      _
    $region3: #{tpu_custom_call.1} parent=1 // pred_check_branch
      %10 = sbr.rel (0) target = $region5
    $region4: #{tpu_custom_call.1} parent=1 // pred_region
      _
    $region5: #{tpu_custom_call.1} parent=1 // pred_fallthru
      _
    // Predicated region
    $region6: #{tpu_custom_call.1} parent=1 // pred_check
      _
    $region7: #{tpu_custom_call.1} parent=1 // pred_check_branch
      %12 = sbr.rel (0) target = $region9
    $region8: #{tpu_custom_call.1} parent=1 // pred_region
      _
    $region9: #{tpu_custom_call.1} parent=1 // pred_fallthru
      _
    // Predicated region
    $region10: #{tpu_custom_call.1} parent=1 // pred_check
      _
    $region11: #{tpu_custom_call.1} parent=1 // pred_check_branch
      %14 = sbr.rel (0) target = $region13
    $region12: #{tpu_custom_call.1} parent=1 // pred_region
      _
    $region13: #{tpu_custom_call.1} parent=1 // pred_fallthru
      _
    %v16 = vld [vmem:[%s0] sm:$0xf]
    %v17 = vld [vmem:[%s0 + $0x4] sm:$0xf]
    %v18 = vld [vmem:[%s0 + $0x8] sm:$0xf]
    %v19 = vld [vmem:[%s0 + $0xc] sm:$0xf]
    %v20 = vld [vmem:[%s1] sm:$0xf]
    %v21 = vld [vmem:[%s1 + $0x4] sm:$0x1]
    %v26 = vunpack.c.l.b16 %v16
    %v27 = vunpack.c.l.b16 %v17
    %v28 = vunpack.c.l.b16 %v18
    %v29 = vunpack.c.l.b16 %v19
    %v30 = vpack.c.b16 %v27, %v26
    %v31 = vpack.c.b16 %v29, %v28
    %v34 = vunpack.c.l.b16 %v20
    %v35 = vunpack.c.l.b16 %v21
    %v36 = vpack.c.b16 %v35, %v34
    %vm37 = vcmask 80896
    %v39 = vsel %vm37, %v30, 0
    %v42 = vsel %vm37, %v31, 0
    %vm44 = vcmask 1044480
    %v46 = vsel %vm44, %v36, 0
    %48 = vmatprep.subr.bf16.mxu0 0
    %49 = vmatpush1.bf16.msra.mxu0 %v46
    %50 = vmatprep.subr.bf16.mxu0 0
    %51 = vmatpush1.bf16.msra.mxu0 0
    %52 = vmatprep.subr.bf16.mxu0 0
    %53 = vmatpush1.bf16.msra.mxu0 0
    %54 = vmatprep.subr.bf16.mxu0 0
    %55 = vmatpush1.bf16.msra.mxu0 0
    %56 = vmatprep.subr.bf16.mxu0 0
    %57 = vmatpush1.bf16.msra.mxu0 0
    %58 = vmatprep.subr.bf16.mxu0 0
    %59 = vmatpush1.bf16.msra.mxu0 0
    %60 = vmatprep.subr.bf16.mxu0 0
    %61 = vmatpush1.bf16.msra.mxu0 0
    %62 = vmatprep.subr.bf16.mxu0 0
    %63 = vmatpush1.bf16.msra.mxu0 0
    %64 = vmatprep.subr.bf16.mxu0 0
    %65 = vmatpush1.bf16.msra.mxu0 0
    %66 = vmatprep.subr.bf16.mxu0 0
    %67 = vmatpush1.bf16.msra.mxu0 0
    %68 = vmatprep.subr.bf16.mxu0 0
    %69 = vmatpush1.bf16.msra.mxu0 0
    %70 = vmatprep.subr.bf16.mxu0 0
    %71 = vmatpush1.bf16.msra.mxu0 0
    %72 = vmatprep.subr.bf16.mxu0 0
    %73 = vmatpush1.bf16.msra.mxu0 0
    %74 = vmatprep.subr.bf16.mxu0 0
    %75 = vmatpush1.bf16.msra.mxu0 0
    %76 = vmatprep.subr.bf16.mxu0 0
    %77 = vmatpush1.bf16.msra.mxu0 0
    %78 = vmatprep.subr.bf16.mxu0 0
    %79 = vmatpush1.bf16.msra.mxu0 0
    %80 = vmatprep.mubr.bf16.mxu0 0
    %81 = vmatmul.mubr.bf16.gmra.mrb[0].mxu0 %v39
    %v82 = vpop.f32.mrb[0].mxu0
    %v83 = vadd.f32 0.0, %v82
    %v84 = vpop.f32.mrb[0].mxu0
    %v85 = vpop.f32.mrb[0].mxu0
    %v86 = vadd.f32 0.0, %v85
    %v87 = vpop.f32.mrb[0].mxu0
    %88 = vmatprep.mubr.bf16.mxu0 0
    %89 = vmatmul.mubr.bf16.gmra.mrb[0].mxu0 %v42
    %v90 = vpop.f32.mrb[0].mxu0
    %v91 = vadd.f32 0.0, %v90
    %v92 = vpop.f32.mrb[0].mxu0
    %v93 = vpop.f32.mrb[0].mxu0
    %v94 = vadd.f32 0.0, %v93
    %v95 = vpop.f32.mrb[0].mxu0
    %96 = vdwg.mxu0
    %v97 = vlaneseq
    %v98 = vshrl.u32 %v97, 7
    %vm99 = vcmp.lt.s32.totalorder %v98, 8
    %v100 = vsel %vm99, %v83, -1e+30
    %v101 = vsel %vm99, %v86, -1e+30
    %v102 = vsel %vm99, %v91, -1e+30
    %v103 = vsel %vm99, %v94, -1e+30
    %v104 = vrot.slane %v100, 4
    %v105 = vmax.f32 %v100, %v104
    %v106 = vrot.slane %v105, 2
    %v107 = vmax.f32 %v105, %v106
    %v108 = vrot.slane %v107, 1
    %v109 = vmax.f32 %v107, %v108
    %v110 = vrot.slane %v101, 4
    %v111 = vmax.f32 %v101, %v110
    %v112 = vrot.slane %v111, 2
    %v113 = vmax.f32 %v111, %v112
    %v114 = vrot.slane %v113, 1
    %v115 = vmax.f32 %v113, %v114
    %v116 = vrot.slane %v102, 4
    %v117 = vmax.f32 %v102, %v116
    %v118 = vrot.slane %v117, 2
    %v119 = vmax.f32 %v117, %v118
    %v120 = vrot.slane %v119, 1
    %v121 = vmax.f32 %v119, %v120
    %v122 = vrot.slane %v103, 4
    %v123 = vmax.f32 %v103, %v122
    %v124 = vrot.slane %v123, 2
    %v125 = vmax.f32 %v123, %v124
    %v126 = vrot.slane %v125, 1
    %v127 = vmax.f32 %v125, %v126
    %v128 = vsub.f32 %v100, %v109
    %v129 = vsub.f32 %v101, %v115
    %v130 = vsub.f32 %v102, %v121
    %v131 = vsub.f32 %v103, %v127
    %v132 = vmul.f32 %v128, 1.442695
    %v133 = vpow.pop %v132
    %v134 = vmul.f32 %v129, 1.442695
    %v135 = vpow.pop %v134
    %v136 = vmul.f32 %v130, 1.442695
    %v137 = vpow.pop %v136
    %v138 = vmul.f32 %v131, 1.442695
    %v139 = vpow.pop %v138
    %v140 = vrot.slane %v133, 4
    %v141 = vadd.f32 %v133, %v140
    %v142 = vrot.slane %v141, 2
    %v143 = vadd.f32 %v141, %v142
    %v144 = vrot.slane %v143, 1
    %v145 = vadd.f32 %v143, %v144
    %v146 = vrot.slane %v135, 4
    %v147 = vadd.f32 %v135, %v146
    %v148 = vrot.slane %v147, 2
    %v149 = vadd.f32 %v147, %v148
    %v150 = vrot.slane %v149, 1
    %v151 = vadd.f32 %v149, %v150
    %v152 = vrot.slane %v137, 4
    %v153 = vadd.f32 %v137, %v152
    %v154 = vrot.slane %v153, 2
    %v155 = vadd.f32 %v153, %v154
    %v156 = vrot.slane %v155, 1
    %v157 = vadd.f32 %v155, %v156
    %v158 = vrot.slane %v139, 4
    %v159 = vadd.f32 %v139, %v158
    %v160 = vrot.slane %v159, 2
    %v161 = vadd.f32 %v159, %v160
    %v162 = vrot.slane %v161, 1
    %v163 = vadd.f32 %v161, %v162
    %v164 = vlog2.pop %v145
    %v165 = vmul.f32 %v164, 0.6931472
    %v166 = vlog2.pop %v151
    %v167 = vmul.f32 %v166, 0.6931472
    %v168 = vlog2.pop %v157
    %v169 = vmul.f32 %v168, 0.6931472
    %v170 = vlog2.pop %v163
    %v171 = vmul.f32 %v170, 0.6931472
    %v172 = vadd.f32 %v109, %v165
    %v173 = vadd.f32 %v115, %v167
    %v174 = vadd.f32 %v121, %v169
    %v175 = vadd.f32 %v127, %v171
    %v176 = vld [vmem:[%s2] sm:$0xf]
    %v178 = vunpack.c.l.s4 1966171168
    %v179 = vunpack.c.0.s8 %v178
    %v180 = vlaneseq
    %v181 = vshrl.u32 %v180, 7
    %v182 = vsub.s32 %v179, %v181
    %v183 = vrot.slane %v176, %v182
    %v184 = vcombine.high %v183, %v183
    %v186 = vunpack.c.l.s4 1966171168
    %v187 = vunpack.c.0.s8 %v186
    %v188 = vlaneseq
    %v189 = vshrl.u32 %v188, 7
    %v190 = vsub.s32 %v187, %v189
    %v191 = vrot.slane %v183, %v190
    %v193 = vunpack.c.l.s4 1966171168
    %v194 = vunpack.c.0.s8 %v193
    %v195 = vlaneseq
    %v196 = vshrl.u32 %v195, 7
    %v197 = vsub.s32 %v194, %v196
    %v198 = vrot.slane %v184, %v197
    %v199 = vcombine.high %v191, %v191
    %v200 = vcombine.high %v198, %v198
    %v201 = vlaneseq
    %v202 = vshrl.u32 %v201, 7
    %v203 = vsub.s32 0, %v202
    %v204 = vrot.slane %v191, %v203
    %v205 = vlaneseq
    %v206 = vshrl.u32 %v205, 7
    %v207 = vsub.s32 0, %v206
    %v208 = vrot.slane %v198, %v207
    %v209 = vlaneseq
    %v210 = vshrl.u32 %v209, 7
    %v211 = vsub.s32 0, %v210
    %v212 = vrot.slane %v199, %v211
    %v213 = vlaneseq
    %v214 = vshrl.u32 %v213, 7
    %v215 = vsub.s32 0, %v214
    %v216 = vrot.slane %v200, %v215
    %vm217 = vcmp.eq.s32.totalorder %v98, %v204
    %vm218 = vcmp.eq.s32.totalorder %v98, %v208
    %vm219 = vcmp.eq.s32.totalorder %v98, %v212
    %vm220 = vcmp.eq.s32.totalorder %v98, %v216
    %v221 = vsel %vm217, %v83, 0.0
    %v222 = vsel %vm218, %v86, 0.0
    %v223 = vsel %vm219, %v91, 0.0
    %v224 = vsel %vm220, %v94, 0.0
    %v225 = vrot.slane %v221, 4
    %v226 = vadd.f32 %v221, %v225
    %v227 = vrot.slane %v226, 2
    %v228 = vadd.f32 %v226, %v227
    %v229 = vrot.slane %v228, 1
    %v230 = vadd.f32 %v228, %v229
    %v231 = vrot.slane %v222, 4
    %v232 = vadd.f32 %v222, %v231
    %v233 = vrot.slane %v232, 2
    %v234 = vadd.f32 %v232, %v233
    %v235 = vrot.slane %v234, 1
    %v236 = vadd.f32 %v234, %v235
    %v237 = vrot.slane %v223, 4
    %v238 = vadd.f32 %v223, %v237
    %v239 = vrot.slane %v238, 2
    %v240 = vadd.f32 %v238, %v239
    %v241 = vrot.slane %v240, 1
    %v242 = vadd.f32 %v240, %v241
    %v243 = vrot.slane %v224, 4
    %v244 = vadd.f32 %v224, %v243
    %v245 = vrot.slane %v244, 2
    %v246 = vadd.f32 %v244, %v245
    %v247 = vrot.slane %v246, 1
    %v248 = vadd.f32 %v246, %v247
    %v249 = vsub.f32 %v172, %v230
    %v250 = vsub.f32 %v173, %v236
    %v251 = vsub.f32 %v174, %v242
    %v252 = vsub.f32 %v175, %v248
    %v253 = vadd.f32 %v249, %v250
    %v254 = vadd.f32 %v253, %v251
    %v255 = vadd.f32 %v254, %v252
    %v256 = vmul.f32 %v255, 0.25
    %257 = vst [vmem:[#allocation2] sm:$0x1] %v256
    // Predicated region
    $region14: #{tpu_custom_call.1} parent=1 // pred_check
      _
    $region15: #{tpu_custom_call.1} parent=1 // pred_check_branch
      %259 = sbr.rel (0) target = $region17
    $region16: #{tpu_custom_call.1} parent=1 // pred_region
      %s261 = ssub.s32 16, 16
      %262 = vsyncadd [#allocation3], %s261
      %s264 = sshll.u32 [#allocation2], 4
      %s265 = int_to_ptr.vmem [resolvable:$true] %s264
      %267 = dma.vmem_to_hbm [thread:$0]  %s265, 16, %s3, [#allocation3]
    $region17: #{tpu_custom_call.1} parent=1 // pred_fallthru
      _
    // Predicated region
    $region18: #{tpu_custom_call.1} parent=1 // pred_check
      _
    $region19: #{tpu_custom_call.1} parent=1 // pred_check_branch
      %269 = sbr.rel (0) target = $region21
    $region20: #{tpu_custom_call.1} parent=1 // pred_region
      %270 = dma.done [#allocation3], 16
    $region21: #{tpu_custom_call.1} parent=1 // pred_fallthru
      _
    %271 = vsyncpa [#allocation3], 1

</llo_original>
